<compile_context>
chip_gen: v5e
topology: v5e:2x2
jax: 0.10.0
libtpu: 0.0.40
codegen_flags: <defaults>
</compile_context>

<pallas_src>
import functools
import math

import jax
import jax.numpy as jnp
from jax import lax
from jax.experimental import pallas as pl
from jax.experimental.pallas import tpu as pltpu

_EPS = 1e-8


def _round_up(x: int, m: int) -> int:
    return ((x + m - 1) // m) * m


def _cosine_mat_kernel(xr_ref, xc_ref, nr_ref, nc_ref, o_ref, acc_ref, *,
                       approx: bool):
    # xr_ref: (tm, tk) row tile (native dtype)
    # xc_ref: (tn, tk) col tile (native dtype)
    # nr_ref: (tm, 1)  f32 row norms
    # nc_ref: (1, tn)  f32 col norms
    # o_ref:  (tm, tn) output tile
    # acc_ref:(tm, tn) f32 accumulator (persists across the K axis)
    k = pl.program_id(2)

    @pl.when(k == 0)
    def _():
        acc_ref[...] = jnp.zeros_like(acc_ref)

    # Partial Gram block on the MXU; contract both last dims (no transpose).
    acc_ref[...] += lax.dot_general(
        xr_ref[...], xc_ref[...],
        dimension_numbers=(((1,), (1,)), ((), ())),
        preferred_element_type=jnp.float32,
    )

    @pl.when(k == pl.num_programs(2) - 1)
    def _():
        denom = jnp.maximum(nr_ref[...] * nc_ref[...], _EPS)   # (tm, tn) f32
        if approx:
            cos = acc_ref[...] * pl.reciprocal(denom, approx=True)  # EUP slot
        else:
            cos = acc_ref[...] / denom                               # exact
        o_ref[...] = (1.0 - cos).astype(o_ref.dtype)


def cosine_mat(mapping: jax.Array, *, tm: int | None = None,
               tn: int | None = None, tk: int | None = None,
               approx_reciprocal: bool = False) -> jax.Array:
    """Pairwise cosine distance matrix of shape (N, N)."""
    N, D = mapping.shape
    out_dtype = mapping.dtype

    # ---- N tiling ---------------------------------------------------------
    if tm is None and tn is None:
        if N <= 512:
            # One tile covering the (padded) problem; output last dim equals
            # the full padded dim so the (8,128) rule is satisfied.
            n_pad = _round_up(N, 8)
            tm = tn = n_pad
        else:
            # Lane-dense (unmasked) 256x256 output tiles; minimal padding.
            tm = tn = 256
            n_pad = _round_up(N, 256)
    else:
        tm = tm if tm is not None else 256
        tn = tn if tn is not None else 256
        n_pad = _round_up(N, math.lcm(tm, tn))

    # ---- D (contraction) tiling --------------------------------------------
    if tk is None:
        if D <= 2048:
            tk, d_pad = D, D          # single K step, full-dim block
        else:
            tk = 1024                 # multiple of 128 -> aligned loads
            d_pad = _round_up(D, tk)
    else:
        d_pad = _round_up(D, tk)

    # ---- pad (zero rows/cols are inert and sliced off at the end) ----------
    x = mapping
    if n_pad != N or d_pad != D:
        x = jnp.pad(x, ((0, n_pad - N), (0, d_pad - D)))

    # ---- hoist per-vector norms out of the kernel (one O(N*D) f32 pass) ----
    x32 = x.astype(jnp.float32)
    norms = jnp.sqrt(jnp.sum(x32 * x32, axis=-1, keepdims=True))   # (n_pad, 1)
    row_norms = norms                                              # (n_pad, 1)
    col_norms = norms.reshape(1, n_pad)                            # (1, n_pad)

    grid = (n_pad // tm, n_pad // tn, d_pad // tk)

    kernel = functools.partial(_cosine_mat_kernel, approx=approx_reciprocal)

    out = pl.pallas_call(
        kernel,
        out_shape=jax.ShapeDtypeStruct((n_pad, n_pad), out_dtype),
        grid_spec=pltpu.PrefetchScalarGridSpec(
            num_scalar_prefetch=0,
            grid=grid,
            in_specs=[
                pl.BlockSpec((tm, tk), lambda i, j, k: (i, k)),   # row tile
                pl.BlockSpec((tn, tk), lambda i, j, k: (j, k)),   # col tile
                pl.BlockSpec((tm, 1), lambda i, j, k: (i, 0)),    # row norms
                pl.BlockSpec((1, tn), lambda i, j, k: (0, j)),    # col norms
            ],
            out_specs=pl.BlockSpec((tm, tn), lambda i, j, k: (i, j)),
            scratch_shapes=[pltpu.VMEM((tm, tn), jnp.float32)],
        ),
        compiler_params=pltpu.CompilerParams(
            dimension_semantics=("parallel", "parallel", "arbitrary"),
        ),
    )(x, x, row_norms, col_norms)

    if n_pad != N:
        out = out[:N, :N]
    return out


def _reference(mapping: jax.Array) -> jax.Array:
    m = mapping.astype(jnp.float32)
    norms = jnp.sqrt(jnp.sum(m * m, axis=-1, keepdims=True))
    return (1.0 - (m @ m.T) / jnp.maximum(norms * norms.T, _EPS)).astype(
        mapping.dtype)


if __name__ == "__main__":
    key = jax.random.PRNGKey(0)

    # Small shapes consistent with the module: 8 vectors, embedding dim 32.
    N, D = 8, 32
    mapping = jax.random.normal(key, (N, D), dtype=jnp.float32)

    dist = jax.block_until_ready(cosine_mat(mapping))
    ref = _reference(mapping)
    assert dist.shape == (N, N)
    assert jnp.allclose(dist, ref, atol=1e-4, rtol=1e-4), "mismatch vs reference"
    assert jnp.allclose(jnp.diagonal(dist), 0.0, atol=1e-4), "diag should be ~0"

    # Exercise the N-padding path (N not a multiple of 8).
    mapping2 = jax.random.normal(jax.random.PRNGKey(1), (12, 32),
                                 dtype=jnp.float32)
    dist2 = jax.block_until_ready(cosine_mat(mapping2))
    ref2 = _reference(mapping2)
    assert dist2.shape == (12, 12)
    assert jnp.allclose(dist2, ref2, atol=1e-4, rtol=1e-4), "mismatch (padded N)"

    # Exercise the K-tiled reduction path (D > 2048 -> accumulator + pl.when).
    mapping3 = jax.random.normal(jax.random.PRNGKey(2), (16, 2304),
                                 dtype=jnp.float32)
    dist3 = jax.block_until_ready(cosine_mat(mapping3))
    ref3 = _reference(mapping3)
    assert dist3.shape == (16, 16)
    assert jnp.allclose(dist3, ref3, atol=1e-3, rtol=1e-3), "mismatch (tiled K)"

    print("KERNEL_OK")
</pallas_src>

<mosaic_0001>
module attributes {stable_mosaic.version = 11 : i64} {
  func.func @_cosine_mat_kernel(%arg0: i32, %arg1: i32, %arg2: i32, %arg3: memref<8x32xf32, #tpu.memory_space<vmem>>, %arg4: memref<8x32xf32, #tpu.memory_space<vmem>>, %arg5: memref<8x1xf32, #tpu.memory_space<vmem>>, %arg6: memref<1x8xf32, #tpu.memory_space<vmem>>, %arg7: memref<8x8xf32, #tpu.memory_space<vmem>>, %arg8: memref<8x8xf32, #tpu.memory_space<vmem>>) attributes {dimension_semantics = [#tpu.dimension_semantics<parallel>, #tpu.dimension_semantics<parallel>, #tpu.dimension_semantics<arbitrary>], iteration_bounds = array<i64: 1, 1, 1>, scalar_prefetch = 0 : i64, scratch_operands = 1 : i64, tpu.core_type = #tpu.core_type<tc>, window_params = [{transform_indices = @transform_0, window_bounds = array<i64: 8, 32>}, {transform_indices = @transform_1, window_bounds = array<i64: 8, 32>}, {transform_indices = @transform_2, window_bounds = array<i64: 8, 1>}, {transform_indices = @transform_3, window_bounds = array<i64: 1, 8>}, {transform_indices = @transform_4, window_bounds = array<i64: 8, 8>}]} {
    %c0_i32 = arith.constant 0 : i32
    %0 = arith.cmpi eq, %arg2, %c0_i32 : i32
    %1 = arith.extui %0 : i1 to i32
    %c0_i32_0 = arith.constant 0 : i32
    %2 = arith.cmpi ne, %1, %c0_i32_0 : i32
    scf.if %2 {
      %cst_10 = arith.constant 0.000000e+00 : f32
      %12 = vector.broadcast %cst_10 : f32 to vector<8x8xf32>
      %c0_11 = arith.constant 0 : index
      %c0_12 = arith.constant 0 : index
      %13 = vector.load %arg8[%c0_11, %c0_12] : memref<8x8xf32, #tpu.memory_space<vmem>>, vector<8x8xf32>
      tpu.vector_store %arg8[%c0_11, %c0_12], %12 {strides = array<i32>} : memref<8x8xf32, #tpu.memory_space<vmem>>, vector<8x8xf32>,
    } else {
    }
    %c0 = arith.constant 0 : index
    %c0_1 = arith.constant 0 : index
    %3 = vector.load %arg8[%c0, %c0_1] : memref<8x8xf32, #tpu.memory_space<vmem>>, vector<8x8xf32>
    %c0_2 = arith.constant 0 : index
    %c0_3 = arith.constant 0 : index
    %4 = vector.load %arg3[%c0_2, %c0_3] : memref<8x32xf32, #tpu.memory_space<vmem>>, vector<8x32xf32>
    %c0_4 = arith.constant 0 : index
    %c0_5 = arith.constant 0 : index
    %5 = vector.load %arg4[%c0_4, %c0_5] : memref<8x32xf32, #tpu.memory_space<vmem>>, vector<8x32xf32>
    %cst = arith.constant dense<0.000000e+00> : vector<8x8xf32>
    %6 = tpu.matmul %4, %5, %cst {dimension_numbers = #tpu.dot_dimension_numbers<[1], [1], [0], [0], [0, 0, 1, 0], [], []>} : vector<8x32xf32>, vector<8x32xf32>, vector<8x8xf32> -> vector<8x8xf32>
    %7 = arith.addf %3, %6 : vector<8x8xf32>
    %c0_6 = arith.constant 0 : index
    %c0_7 = arith.constant 0 : index
    %8 = vector.load %arg8[%c0_6, %c0_7] : memref<8x8xf32, #tpu.memory_space<vmem>>, vector<8x8xf32>
    tpu.vector_store %arg8[%c0_6, %c0_7], %7 {strides = array<i32>} : memref<8x8xf32, #tpu.memory_space<vmem>>, vector<8x8xf32>,
    %c0_i32_8 = arith.constant 0 : i32
    %9 = arith.cmpi eq, %arg2, %c0_i32_8 : i32
    %10 = arith.extui %9 : i1 to i32
    %c0_i32_9 = arith.constant 0 : i32
    %11 = arith.cmpi ne, %10, %c0_i32_9 : i32
    scf.if %11 {
      %c0_10 = arith.constant 0 : index
      %c0_11 = arith.constant 0 : index
      %12 = vector.load %arg5[%c0_10, %c0_11] : memref<8x1xf32, #tpu.memory_space<vmem>>, vector<8x1xf32>
      %c0_12 = arith.constant 0 : index
      %c0_13 = arith.constant 0 : index
      %13 = vector.load %arg6[%c0_12, %c0_13] : memref<1x8xf32, #tpu.memory_space<vmem>>, vector<1x8xf32>
      %14 = vector.broadcast %12 : vector<8x1xf32> to vector<8x8xf32>
      %15 = vector.broadcast %13 : vector<1x8xf32> to vector<8x8xf32>
      %16 = arith.mulf %14, %15 : vector<8x8xf32>
      %cst_14 = arith.constant 9.99999993E-9 : f32
      %17 = vector.broadcast %cst_14 : f32 to vector<8x8xf32>
      %18 = arith.maximumf %16, %17 : vector<8x8xf32>
      %c0_15 = arith.constant 0 : index
      %c0_16 = arith.constant 0 : index
      %19 = vector.load %arg8[%c0_15, %c0_16] : memref<8x8xf32, #tpu.memory_space<vmem>>, vector<8x8xf32>
      %20 = arith.divf %19, %18 : vector<8x8xf32>
      %cst_17 = arith.constant 1.000000e+00 : f32
      %21 = vector.broadcast %cst_17 : f32 to vector<8x8xf32>
      %22 = arith.subf %21, %20 : vector<8x8xf32>
      %c0_18 = arith.constant 0 : index
      %c0_19 = arith.constant 0 : index
      %23 = vector.load %arg7[%c0_18, %c0_19] : memref<8x8xf32, #tpu.memory_space<vmem>>, vector<8x8xf32>
      tpu.vector_store %arg7[%c0_18, %c0_19], %22 {strides = array<i32>} : memref<8x8xf32, #tpu.memory_space<vmem>>, vector<8x8xf32>,
    } else {
    }
    return
  }
  func.func @transform_0(%arg0: i32, %arg1: i32, %arg2: i32) -> (i32, i32) {
    %c0_i32 = arith.constant 0 : i32
    return %arg0, %arg2 : i32, i32
  }
  func.func @transform_1(%arg0: i32, %arg1: i32, %arg2: i32) -> (i32, i32) {
    %c0_i32 = arith.constant 0 : i32
    return %arg1, %arg2 : i32, i32
  }
  func.func @transform_2(%arg0: i32, %arg1: i32, %arg2: i32) -> (i32, i32) {
    %c0_i32 = arith.constant 0 : i32
    %c0_i32_0 = arith.constant 0 : i32
    return %arg0, %c0_i32 : i32, i32
  }
  func.func @transform_3(%arg0: i32, %arg1: i32, %arg2: i32) -> (i32, i32) {
    %c0_i32 = arith.constant 0 : i32
    %c0_i32_0 = arith.constant 0 : i32
    return %c0_i32, %arg1 : i32, i32
  }
  func.func @transform_4(%arg0: i32, %arg1: i32, %arg2: i32) -> (i32, i32) {
    %c0_i32 = arith.constant 0 : i32
    return %arg0, %arg1 : i32, i32
  }
}

</mosaic_0001>

<llo_original>
// kernel: tpu_custom_call.1
$region0: #{tpu_custom_call.1}
  #allocation0 [shape = 'u32[]', space=smem, size = 0x4, offset = 0x4, fixed_abs, tag = 'smem constant byte address 0x4 - core index']
  #allocation1 [shape = 'u32[72,128]{1,0:T(1,128)}', space=vmem, size = 0x9000, scoped, tag = 'internal scratch']
  #allocation2 [shape = 'f32[8,8]{1,0:T(8,128)}', space=vmem, size = 0x1000, scoped, tag = 'scratch operand']
  %s0 = inlined_call_operand.vmem [shape: f32[8,32], index: 0, kind: input, shape index: {}]
  %s1 = inlined_call_operand.hbm [shape: f32[8,32], index: 1, kind: input, shape index: {}]
  %s2 = inlined_call_operand.vmem [shape: f32[8,1], index: 2, kind: input, shape index: {}]
  %s3 = inlined_call_operand.vmem [shape: f32[1,8], index: 3, kind: input, shape index: {}]
  %s4 = inlined_call_operand.hbm [shape: f32[8,8], index: 4, kind: output, shape index: {}]
  %s5 = sld [smem:[#allocation0]]
  $region38: #{tpu_custom_call.1} parent=0
    _
  %s7 = ssub.s32 1, %s5
  %s8 = scalar_select 0, %s7, %s5
  $region1: #{tpu_custom_call.1} parent=0
    #allocation3 [shape = 'u8[4096]{0}', space=vmem, size = 0x1000, scoped, tag = 'input window, operand 1, single buffered']
    #allocation4 [shape = 's32[1]{0}', space=sflag, size = 0x4, scoped, tag = 'scoped memory for tpu_custom_call.1']
    #allocation5 [shape = 's32[1]{0}', space=sflag, size = 0x4, scoped, tag = 'scoped memory for tpu_custom_call.1']
    #allocation6 [shape = 'u8[4096]{0}', space=vmem, size = 0x1000, scoped, tag = 'output window, operand 0, single buffered']
    %9 = vsyncpa [#allocation4], 0
    %10 = vsyncpa [#allocation5], 0
    // Predicated region
    $region2: #{tpu_custom_call.1} parent=1 // pred_check
      _
    $region3: #{tpu_custom_call.1} parent=1 // pred_check_branch
      %12 = sbr.rel (0) target = $region5
    $region4: #{tpu_custom_call.1} parent=1 // pred_region
      _
    $region5: #{tpu_custom_call.1} parent=1 // pred_fallthru
      _
    // Predicated region
    $region6: #{tpu_custom_call.1} parent=1 // pred_check
      _
    $region7: #{tpu_custom_call.1} parent=1 // pred_check_branch
      %14 = sbr.rel (0) target = $region9
    $region8: #{tpu_custom_call.1} parent=1 // pred_region
      %16 = vsyncadd [#allocation4], 0
      %s18 = sshll.u32 %s1, 4
      %s19 = int_to_ptr.hbm [resolvable:$true] %s18
      %s20 = sshll.u32 [#allocation3], 4
      %s21 = int_to_ptr.vmem [resolvable:$true] %s20
      %23 = dma.hbm_to_vmem [thread:$0]  %s19, 128, %s21, [#allocation4]
    $region9: #{tpu_custom_call.1} parent=1 // pred_fallthru
      _
    // Predicated region
    $region10: #{tpu_custom_call.1} parent=1 // pred_check
      _
    $region11: #{tpu_custom_call.1} parent=1 // pred_check_branch
      %25 = sbr.rel (0) target = $region13
    $region12: #{tpu_custom_call.1} parent=1 // pred_region
      _
    $region13: #{tpu_custom_call.1} parent=1 // pred_fallthru
      _
    // Predicated region
    $region14: #{tpu_custom_call.1} parent=1 // pred_check
      _
    $region15: #{tpu_custom_call.1} parent=1 // pred_check_branch
      %27 = sbr.rel (0) target = $region17
    $region16: #{tpu_custom_call.1} parent=1 // pred_region
      _
    $region17: #{tpu_custom_call.1} parent=1 // pred_fallthru
      _
    // Predicated region
    $region18: #{tpu_custom_call.1} parent=1 // pred_check
      _
    $region19: #{tpu_custom_call.1} parent=1 // pred_check_branch
      %29 = sbr.rel (0) target = $region21
    $region20: #{tpu_custom_call.1} parent=1 // pred_region
      %31 = dma.done [#allocation4], 128
    $region21: #{tpu_custom_call.1} parent=1 // pred_fallthru
      _
    %p32 = scmp.eq.s32.totalorder 0, 0
    // Predicated region
    $region22: #{tpu_custom_call.1} parent=1 // pred_check
      %p33 = pneg %p32
    $region23: #{tpu_custom_call.1} parent=1 // pred_check_branch
      %35 = sbr.rel (%p33) target = $region25
    $region24: #{tpu_custom_call.1} parent=1 // pred_region
      %vm36 = vcmask 64512
      %37 = vst.msk [vmem:[#allocation2] sm:$0xff] %vm36, 0.0
    $region25: #{tpu_custom_call.1} parent=1 // pred_fallthru
      _
    %v38 = vld [vmem:[#allocation2] sm:$0xff]
    %v39 = vld [vmem:[%s0] sm:$0xff]
    %v40 = vld [vmem:[#allocation3] sm:$0xff]
    %vm41 = vcmask 261120
    %v43 = vsel %vm41, %v39, 0
    %v46 = vsel %vm41, %v40, 0
    %48 = vmatpush.xpose.msra.mxu0 0.0
    %49 = vmatpush.xpose.msra.mxu0 0.0
    %50 = vmatpush.xpose.msra.mxu0 0.0
    %51 = vmatpush.xpose.msra.mxu0 0.0
    %52 = vmatpush.xpose.msra.mxu0 0.0
    %53 = vmatpush.xpose.msra.mxu0 0.0
    %54 = vmatpush.xpose.msra.mxu0 0.0
    %55 = vmatpush.xpose.msra.mxu0 0.0
    %56 = vmatpush.xpose.msra.mxu0 0.0
    %57 = vmatpush.xpose.msra.mxu0 0.0
    %58 = vmatpush.xpose.msra.mxu0 0.0
    %59 = vmatpush.xpose.msra.mxu0 0.0
    %60 = vmatpush.xpose.msra.mxu0 0.0
    %61 = vmatpush.xpose.msra.mxu0 0.0
    %62 = vmatpush.xpose.msra.mxu0 0.0
    %63 = vmatpush.xpose.msra.mxu0 %v46
    %64 = vmatmul.f32.gmra.mxu0 %v43
    %v65 = vpop.f32.mrf.mxu0
    %v66 = vadd.f32 0.0, %v65
    %67 = vdwg.mxu0
    %v68 = vadd.f32 %v38, %v66
    %vm69 = vcmask 64512
    %70 = vst.msk [vmem:[#allocation2] sm:$0xff] %vm69, %v68
    // Predicated region
    $region26: #{tpu_custom_call.1} parent=1 // pred_check
      %p71 = pneg %p32
    $region27: #{tpu_custom_call.1} parent=1 // pred_check_branch
      %73 = sbr.rel (%p71) target = $region29
    $region28: #{tpu_custom_call.1} parent=1 // pred_region
      %v74 = vld [vmem:[%s2] sm:$0xff]
      %v75 = vld [vmem:[%s3] sm:$0x1]
      %77 = vset.pattern.permute.xlu0 0
      %78 = vperm.xlu0 %77, %v74
      %v79 = vpop.permute.xlu0 %78
      %v82 = vperm.slane %v75, 0
      %v84 = vmul.f32 %v79, %v82
      %v85 = vmax.f32 %v84, 1e-08
      %v86 = vld [vmem:[#allocation2] sm:$0xff]
      %v87 = vrcp.pop %v85
      %v88 = vmul.f32 %v85, %v87
      %v89 = vsub.f32 1.0, %v88
      %v90 = vmul.f32 %v87, %v89
      %v91 = vadd.f32 %v87, %v90
      %vm92 = vweird.f32 %v85
      %vm93 = vweird.f32 %v87
      %vm94 = vmor %vm92, %vm93
      %v95 = vsel %vm94, %v87, %v91
      %v96 = vand.u32 2147483647, %v85
      %vm97 = vcmp.eq.f32.partialorder %v96, 8.507059e+37
      %v98 = vand.u32 %v85, 2147483648
      %v99 = vor.u32 1.1754944e-38, %v98
      %v100 = vsel %vm97, %v99, %v95
      %v101 = vmul.f32 %v86, %v100
      %v102 = vsub.f32 1.0, %v101
      %103 = vst.msk [vmem:[#allocation6] sm:$0xff] %vm69, %v102
    $region29: #{tpu_custom_call.1} parent=1 // pred_fallthru
      _
    // Predicated region
    $region30: #{tpu_custom_call.1} parent=1 // pred_check
      _
    $region31: #{tpu_custom_call.1} parent=1 // pred_check_branch
      %105 = sbr.rel (0) target = $region33
    $region32: #{tpu_custom_call.1} parent=1 // pred_region
      %107 = vsyncadd [#allocation5], 0
      %s109 = sshll.u32 [#allocation6], 4
      %s110 = int_to_ptr.vmem [resolvable:$true] %s109
      %s111 = sshll.u32 %s4, 4
      %s112 = int_to_ptr.hbm [resolvable:$true] %s111
      %114 = dma.vmem_to_hbm [thread:$0]  %s110, 128, %s112, [#allocation5]
    $region33: #{tpu_custom_call.1} parent=1 // pred_fallthru
      _
    // Predicated region
    $region34: #{tpu_custom_call.1} parent=1 // pred_check
      _
    $region35: #{tpu_custom_call.1} parent=1 // pred_check_branch
      %116 = sbr.rel (0) target = $region37
    $region36: #{tpu_custom_call.1} parent=1 // pred_region
      %118 = dma.done [#allocation5], 128
    $region37: #{tpu_custom_call.1} parent=1 // pred_fallthru
      _
    %119 = vsyncpa [#allocation4], 1
    %120 = vsyncpa [#allocation5], 1

</llo_original>
